<compile_context>
chip_gen: v5e
topology: v5e:2x2
jax: 0.10.0
libtpu: 0.0.40
codegen_flags: <defaults>
</compile_context>

<pallas_src>
import math
from functools import partial

import jax
import jax.numpy as jnp
from jax import lax
from jax.experimental import pallas as pl
from jax.experimental.pallas import tpu as pltpu


def _pe_dropout_kernel(seed_ref, x_ref, pe_ref, o_ref, *,
                       p, training, tile_s, batch, d_model):
    """One S-tile: y = dropout(x + pe) with broadcast over the batch axis."""
    x = x_ref[...]                                    # (tS, B, D)
    pe = pe_ref[...]                                  # (tS, 1, D)
    y = x.astype(jnp.float32) + pe.astype(jnp.float32)

    if training and p > 0.0:
        shape = y.shape
        # Global element index (grid-invariant): same mask regardless of tiling.
        s_off = pl.program_id(0) * tile_s
        gs = lax.broadcasted_iota(jnp.int32, shape, 0) + s_off
        gb = lax.broadcasted_iota(jnp.int32, shape, 1)
        gd = lax.broadcasted_iota(jnp.int32, shape, 2)
        lin = (gs * batch + gb) * d_model + gd        # int32 linear index

        # Counter-based hash PRNG (lowbias32), keyed by the seed.
        z = lin.astype(jnp.uint32) ^ seed_ref[0].astype(jnp.uint32)
        z = z ^ (z >> 16)
        z = z * jnp.uint32(0x7FEB352D)
        z = z ^ (z >> 15)
        z = z * jnp.uint32(0x846CA68B)
        z = z ^ (z >> 16)

        u24 = z >> 8                                   # uniform in [0, 2^24)
        thresh = jnp.uint32(int(round(p * (1 << 24)))) # drop iff u24 < thresh
        keep = (u24 >= thresh).astype(jnp.float32)
        y = y * (keep * jnp.float32(1.0 / (1.0 - p)))  # single fused multiply

    o_ref[...] = y.astype(o_ref.dtype)


def make_pe_buffer(d_model: int, max_len: int = 5000, dtype=jnp.float32):
    """Sinusoidal pe buffer [max_len, 1, d_model] (plain JAX glue, matches torch)."""
    position = jnp.arange(max_len, dtype=jnp.float32)[:, None]
    div_term = jnp.exp(jnp.arange(0, d_model, 2, dtype=jnp.float32)
                       * (-math.log(10000.0) / d_model))
    pe = jnp.zeros((max_len, 1, d_model), dtype=dtype)
    pe = pe.at[:, 0, 0::2].set(jnp.sin(position * div_term).astype(dtype))
    pe = pe.at[:, 0, 1::2].set(jnp.cos(position * div_term).astype(dtype))
    return pe


def _choose_tile_s(S, B, D, itemsize, target_bytes=1 << 20):
    """Largest S-tile whose x slab is ~<= 1 MiB (keeps 2x-in/2x-out + pe well
    under the smallest scoped-VMEM default, 16 MiB on v5e / 32 MiB on v7x)."""
    row_bytes = max(1, B * D * itemsize)
    ts = int(min(S, max(1, target_bytes // row_bytes)))
    if ts < S and ts >= 8:
        ts = (ts // 8) * 8          # sublane-friendly when actually tiling
    return max(1, ts)


def positional_encoding_forward(x, pe, seed, *, p: float = 0.1, training: bool = True):
    """x: (S, B, D); pe: (max_len, 1, D); seed: int32[1] (scalar-prefetch)."""
    S, B, D = x.shape
    pe_s = pe[:S]                                      # same slice as torch forward
    itemsize = jnp.dtype(x.dtype).itemsize
    tS = _choose_tile_s(S, B, D, itemsize)
    grid = (pl.cdiv(S, tS),)

    kernel = partial(_pe_dropout_kernel, p=float(p), training=bool(training),
                     tile_s=tS, batch=B, d_model=D)

    cost = pl.CostEstimate(
        flops=2 * S * B * D,
        transcendentals=0,
        bytes_accessed=(2 * S * B * D + S * D) * itemsize,
    )

    return pl.pallas_call(
        kernel,
        out_shape=jax.ShapeDtypeStruct((S, B, D), x.dtype),
        grid_spec=pltpu.PrefetchScalarGridSpec(
            num_scalar_prefetch=1,                     # seed lands in SMEM
            grid=grid,
            in_specs=[
                # x: tiled along S, full (B, D) in the last two (layout-legal) dims.
                pl.BlockSpec((tS, B, D), lambda i, seed_ref: (i, 0, 0)),
                # pe: tiny (tS, 1, D) tile, varies only with the S tile.
                pl.BlockSpec((tS, 1, D), lambda i, seed_ref: (i, 0, 0)),
            ],
            out_specs=pl.BlockSpec((tS, B, D), lambda i, seed_ref: (i, 0, 0)),
        ),
        compiler_params=pltpu.CompilerParams(
            dimension_semantics=("parallel",),         # v7x: shard grid over 2 TCs
        ),
        cost_estimate=cost,
    )(seed, x, pe_s)


if __name__ == "__main__":
    p = 0.1
    seed = jnp.array([0], dtype=jnp.int32)

    # --- Small shapes consistent with the module: seq=8, batch=2, d_model=32.
    S, B, D = 8, 2, 32
    x = jax.random.normal(jax.random.PRNGKey(0), (S, B, D), dtype=jnp.float32)
    pe = make_pe_buffer(D, max_len=64)
    ref = x + pe[:S]

    y_eval = jax.block_until_ready(
        positional_encoding_forward(x, pe, seed, p=p, training=False))
    assert y_eval.shape == (S, B, D)
    assert jnp.allclose(y_eval, ref, atol=1e-6), "eval-mode mismatch"

    y_train = jax.block_until_ready(
        positional_encoding_forward(x, pe, seed, p=p, training=True))
    scaled = ref / (1.0 - p)
    ok = jnp.logical_or(jnp.isclose(y_train, 0.0, atol=1e-6),
                        jnp.isclose(y_train, scaled, atol=1e-5, rtol=1e-5))
    assert bool(jnp.all(ok)), "training-mode dropout semantics mismatch"

    # --- Larger shape: exercises the multi-tile, pipelined grid path.
    S2, B2, D2 = 1024, 4, 256
    x2 = jax.random.normal(jax.random.PRNGKey(1), (S2, B2, D2), dtype=jnp.float32)
    pe2 = make_pe_buffer(D2, max_len=2048)
    ref2 = x2 + pe2[:S2]

    y2_eval = jax.block_until_ready(
        positional_encoding_forward(x2, pe2, seed, p=p, training=False))
    assert jnp.allclose(y2_eval, ref2, atol=1e-5), "eval-mode mismatch (large)"

    y2_train = jax.block_until_ready(
        positional_encoding_forward(x2, pe2, seed, p=p, training=True))
    scaled2 = ref2 / (1.0 - p)
    ok2 = jnp.logical_or(jnp.isclose(y2_train, 0.0, atol=1e-6),
                         jnp.isclose(y2_train, scaled2, atol=1e-4, rtol=1e-5))
    assert bool(jnp.all(ok2)), "training-mode dropout semantics mismatch (large)"
    drop_frac = float(jnp.mean(
        jnp.isclose(y2_train, 0.0, atol=1e-6).astype(jnp.float32)))
    assert abs(drop_frac - p) < 0.02, f"drop fraction {drop_frac} far from p={p}"

    print("KERNEL_OK")
</pallas_src>

<mosaic_0001>
module attributes {stable_mosaic.version = 11 : i64} {
  func.func @_pe_dropout_kernel(%arg0: i32, %arg1: memref<1xi32, #tpu.memory_space<smem>>, %arg2: memref<8x2x32xf32, #tpu.memory_space<vmem>>, %arg3: memref<8x1x32xf32, #tpu.memory_space<vmem>>, %arg4: memref<8x2x32xf32, #tpu.memory_space<vmem>>) attributes {dimension_semantics = [#tpu.dimension_semantics<parallel>], iteration_bounds = array<i64: 1>, scalar_prefetch = 1 : i64, scratch_operands = 0 : i64, tpu.core_type = #tpu.core_type<tc>, window_params = [{transform_indices = @transform_0, window_bounds = array<i64: 8, 2, 32>}, {transform_indices = @transform_1, window_bounds = array<i64: 8, 1, 32>}, {transform_indices = @transform_2, window_bounds = array<i64: 8, 2, 32>}]} {
    %c0 = arith.constant 0 : index
    %c0_0 = arith.constant 0 : index
    %c0_1 = arith.constant 0 : index
    %0 = vector.load %arg2[%c0, %c0_0, %c0_1] : memref<8x2x32xf32, #tpu.memory_space<vmem>>, vector<8x2x32xf32>
    %c0_2 = arith.constant 0 : index
    %c0_3 = arith.constant 0 : index
    %c0_4 = arith.constant 0 : index
    %1 = vector.load %arg3[%c0_2, %c0_3, %c0_4] : memref<8x1x32xf32, #tpu.memory_space<vmem>>, vector<8x1x32xf32>
    %2 = vector.broadcast %1 : vector<8x1x32xf32> to vector<8x2x32xf32>
    %3 = arith.addf %0, %2 : vector<8x2x32xf32>
    %c0_5 = arith.constant 0 : index
    %c0_6 = arith.constant 0 : index
    %c0_7 = arith.constant 0 : index
    %4 = vector.load %arg4[%c0_5, %c0_6, %c0_7] : memref<8x2x32xf32, #tpu.memory_space<vmem>>, vector<8x2x32xf32>
    tpu.vector_store %arg4[%c0_5, %c0_6, %c0_7], %3 {strides = array<i32>} : memref<8x2x32xf32, #tpu.memory_space<vmem>>, vector<8x2x32xf32>,
    return
  }
  func.func @transform_0(%arg0: i32, %arg1: memref<1xi32, #tpu.memory_space<smem>>) -> (i32, i32, i32) {
    %c0_i32 = arith.constant 0 : i32
    %c0_i32_0 = arith.constant 0 : i32
    %c0_i32_1 = arith.constant 0 : i32
    return %arg0, %c0_i32, %c0_i32_0 : i32, i32, i32
  }
  func.func @transform_1(%arg0: i32, %arg1: memref<1xi32, #tpu.memory_space<smem>>) -> (i32, i32, i32) {
    %c0_i32 = arith.constant 0 : i32
    %c0_i32_0 = arith.constant 0 : i32
    %c0_i32_1 = arith.constant 0 : i32
    return %arg0, %c0_i32, %c0_i32_0 : i32, i32, i32
  }
  func.func @transform_2(%arg0: i32, %arg1: memref<1xi32, #tpu.memory_space<smem>>) -> (i32, i32, i32) {
    %c0_i32 = arith.constant 0 : i32
    %c0_i32_0 = arith.constant 0 : i32
    %c0_i32_1 = arith.constant 0 : i32
    return %arg0, %c0_i32, %c0_i32_0 : i32, i32, i32
  }
}

</mosaic_0001>

<llo_original>
// kernel: tpu_custom_call.1
$region0: #{tpu_custom_call.1}
  #allocation0 [shape = 'u32[]', space=smem, size = 0x4, offset = 0x4, fixed_abs, tag = 'smem constant byte address 0x4 - core index']
  #allocation1 [shape = 'u32[72,128]{1,0:T(1,128)}', space=vmem, size = 0x9000, scoped, tag = 'internal scratch']
  #allocation2 [shape = 's32[1]{0}', space=sflag, size = 0x4, scoped, tag = 'scoped memory for tpu_custom_call.1']
  #allocation3 [shape = 's32[1]{0:T(128)S(6)}', space=smem, size = 0x200, scoped, tag = 'prefetched SMEM operand 0']
  %s0 = inlined_call_operand.<no memory space> [shape: s32[1], index: 0, kind: input, shape index: {}]
  %s1 = inlined_call_operand.hbm [shape: f32[8,2,32], index: 1, kind: input, shape index: {}]
  %s2 = inlined_call_operand.hbm [shape: f32[8,1,32], index: 2, kind: input, shape index: {}]
  %s3 = inlined_call_operand.hbm [shape: f32[8,2,32], index: 3, kind: output, shape index: {}]
  %s4 = sld [smem:[#allocation0]]
  $region26: #{tpu_custom_call.1} parent=0
    _
  %s6 = ssub.s32 1, %s4
  %s7 = scalar_select 0, %s6, %s4
  %8 = sst [smem:[#allocation3]] %s0
  $region1: #{tpu_custom_call.1} parent=0
    #allocation4 [shape = 'u8[8192]{0}', space=vmem, size = 0x2000, scoped, tag = 'input window, operand 1, single buffered']
    #allocation5 [shape = 's32[1]{0}', space=sflag, size = 0x4, scoped, tag = 'scoped memory for tpu_custom_call.1']
    #allocation6 [shape = 's32[1]{0}', space=sflag, size = 0x4, scoped, tag = 'scoped memory for tpu_custom_call.1']
    #allocation7 [shape = 'u8[4096]{0}', space=vmem, size = 0x1000, scoped, tag = 'input window, operand 2, single buffered']
    #allocation8 [shape = 's32[1]{0}', space=sflag, size = 0x4, scoped, tag = 'scoped memory for tpu_custom_call.1']
    #allocation9 [shape = 'u8[8192]{0}', space=vmem, size = 0x2000, scoped, tag = 'output window, operand 0, single buffered']
    %9 = vsyncpa [#allocation5], 0
    %10 = vsyncpa [#allocation8], 0
    %11 = vsyncpa [#allocation6], 0
    // Predicated region
    $region2: #{tpu_custom_call.1} parent=1 // pred_check
      _
    $region3: #{tpu_custom_call.1} parent=1 // pred_check_branch
      %13 = sbr.rel (0) target = $region5
    $region4: #{tpu_custom_call.1} parent=1 // pred_region
      %15 = vsyncadd [#allocation5], 0
      %s16 = sshll.u32 %s1, 4
      %s17 = int_to_ptr.hbm [resolvable:$true] %s16
      %s18 = sshll.u32 [#allocation4], 4
      %s19 = int_to_ptr.vmem [resolvable:$true] %s18
      %24 = dma.hbm_to_vmem [thread:$0]  %s17, 256, %s19, [#allocation5], 32, 32, 2
    $region5: #{tpu_custom_call.1} parent=1 // pred_fallthru
      _
    // Predicated region
    $region6: #{tpu_custom_call.1} parent=1 // pred_check
      _
    $region7: #{tpu_custom_call.1} parent=1 // pred_check_branch
      %26 = sbr.rel (0) target = $region9
    $region8: #{tpu_custom_call.1} parent=1 // pred_region
      %28 = vsyncadd [#allocation8], 0
      %s29 = sshll.u32 %s2, 4
      %s30 = int_to_ptr.hbm [resolvable:$true] %s29
      %s31 = sshll.u32 [#allocation7], 4
      %s32 = int_to_ptr.vmem [resolvable:$true] %s31
      %37 = dma.hbm_to_vmem [thread:$0]  %s30, 128, %s32, [#allocation8], 16, 16, 1
    $region9: #{tpu_custom_call.1} parent=1 // pred_fallthru
      _
    // Predicated region
    $region10: #{tpu_custom_call.1} parent=1 // pred_check
      _
    $region11: #{tpu_custom_call.1} parent=1 // pred_check_branch
      %39 = sbr.rel (0) target = $region13
    $region12: #{tpu_custom_call.1} parent=1 // pred_region
      %41 = dma.done [#allocation5], 256
    $region13: #{tpu_custom_call.1} parent=1 // pred_fallthru
      _
    // Predicated region
    $region14: #{tpu_custom_call.1} parent=1 // pred_check
      _
    $region15: #{tpu_custom_call.1} parent=1 // pred_check_branch
      %43 = sbr.rel (0) target = $region17
    $region16: #{tpu_custom_call.1} parent=1 // pred_region
      %45 = dma.done [#allocation8], 128
    $region17: #{tpu_custom_call.1} parent=1 // pred_fallthru
      _
    %v46 = vld [vmem:[#allocation4] sm:$0x3]
    %v47 = vld [vmem:[#allocation4 + $0x2] sm:$0x3]
    %v48 = vld [vmem:[#allocation4 + $0x4] sm:$0x3]
    %v49 = vld [vmem:[#allocation4 + $0x6] sm:$0x3]
    %v50 = vld [vmem:[#allocation4 + $0x8] sm:$0x3]
    %v51 = vld [vmem:[#allocation4 + $0xa] sm:$0x3]
    %v52 = vld [vmem:[#allocation4 + $0xc] sm:$0x3]
    %v53 = vld [vmem:[#allocation4 + $0xe] sm:$0x3]
    %v54 = vld [vmem:[#allocation7] sm:$0x1]
    %v55 = vld [vmem:[#allocation7 + $0x1] sm:$0x1]
    %v56 = vld [vmem:[#allocation7 + $0x2] sm:$0x1]
    %v57 = vld [vmem:[#allocation7 + $0x3] sm:$0x1]
    %v58 = vld [vmem:[#allocation7 + $0x4] sm:$0x1]
    %v59 = vld [vmem:[#allocation7 + $0x5] sm:$0x1]
    %v60 = vld [vmem:[#allocation7 + $0x6] sm:$0x1]
    %v61 = vld [vmem:[#allocation7 + $0x7] sm:$0x1]
    %v70 = vperm.slane %v54, 0
    %v71 = vperm.slane %v55, 0
    %v72 = vperm.slane %v56, 0
    %v73 = vperm.slane %v57, 0
    %v74 = vperm.slane %v58, 0
    %v75 = vperm.slane %v59, 0
    %v76 = vperm.slane %v60, 0
    %v77 = vperm.slane %v61, 0
    %v86 = vadd.f32 %v46, %v70
    %v87 = vadd.f32 %v47, %v71
    %v88 = vadd.f32 %v48, %v72
    %v89 = vadd.f32 %v49, %v73
    %v90 = vadd.f32 %v50, %v74
    %v91 = vadd.f32 %v51, %v75
    %v92 = vadd.f32 %v52, %v76
    %v93 = vadd.f32 %v53, %v77
    %vm94 = vcmask 254976
    %95 = vst.msk [vmem:[#allocation9] sm:$0x3] %vm94, %v86
    %96 = vst.msk [vmem:[#allocation9 + $0x2] sm:$0x3] %vm94, %v87
    %97 = vst.msk [vmem:[#allocation9 + $0x4] sm:$0x3] %vm94, %v88
    %98 = vst.msk [vmem:[#allocation9 + $0x6] sm:$0x3] %vm94, %v89
    %99 = vst.msk [vmem:[#allocation9 + $0x8] sm:$0x3] %vm94, %v90
    %100 = vst.msk [vmem:[#allocation9 + $0xa] sm:$0x3] %vm94, %v91
    %101 = vst.msk [vmem:[#allocation9 + $0xc] sm:$0x3] %vm94, %v92
    %102 = vst.msk [vmem:[#allocation9 + $0xe] sm:$0x3] %vm94, %v93
    // Predicated region
    $region18: #{tpu_custom_call.1} parent=1 // pred_check
      _
    $region19: #{tpu_custom_call.1} parent=1 // pred_check_branch
      %104 = sbr.rel (0) target = $region21
    $region20: #{tpu_custom_call.1} parent=1 // pred_region
      %106 = vsyncadd [#allocation6], 0
      %s107 = sshll.u32 [#allocation9], 4
      %s108 = int_to_ptr.vmem [resolvable:$true] %s107
      %s109 = sshll.u32 %s3, 4
      %s110 = int_to_ptr.hbm [resolvable:$true] %s109
      %115 = dma.vmem_to_hbm [thread:$0]  %s108, 256, %s110, [#allocation6], 32, 32, 2
    $region21: #{tpu_custom_call.1} parent=1 // pred_fallthru
      _
    // Predicated region
    $region22: #{tpu_custom_call.1} parent=1 // pred_check
      _
    $region23: #{tpu_custom_call.1} parent=1 // pred_check_branch
      %117 = sbr.rel (0) target = $region25
    $region24: #{tpu_custom_call.1} parent=1 // pred_region
      %119 = dma.done [#allocation6], 256
    $region25: #{tpu_custom_call.1} parent=1 // pred_fallthru
      _
    %120 = vsyncpa [#allocation5], 1
    %121 = vsyncpa [#allocation8], 1
    %122 = vsyncpa [#allocation6], 1

</llo_original>
